<compile_context>
chip_gen: v7x
topology: tpu7x:2x2x1
jax: 0.10.0
libtpu: 0.0.40
codegen_flags: <defaults>
</compile_context>

<pallas_src>
import functools

import jax
import jax.numpy as jnp
from jax.experimental import pallas as pl
from jax.experimental.pallas import tpu as pltpu


# -----------------------------------------------------------------------------
# Matmul (+ optional bias) kernel — used for the 1x1 convs (branch 0, head)
# -----------------------------------------------------------------------------

def _matmul_bias_kernel(a_ref, w_ref, b_ref, o_ref):
    # a: (tm, K) bf16, w: (K, N) bf16, b: (1, N) f32  ->  o: (tm, N)
    acc = jnp.dot(a_ref[...], w_ref[...], preferred_element_type=jnp.float32)
    o_ref[...] = (acc + b_ref[...]).astype(o_ref.dtype)


def _matmul_kernel(a_ref, w_ref, o_ref):
    o_ref[...] = jnp.dot(a_ref[...], w_ref[...],
                         preferred_element_type=jnp.float32).astype(o_ref.dtype)


def matmul_bias(a, w, bias=None, *, out_dtype=jnp.float32, tm=256):
    """(M, K) @ (K, N) [+ bias] with bf16 operands, f32 MXU accumulation."""
    M, K = a.shape
    K2, N = w.shape
    assert K == K2
    n_blk = pl.cdiv(M, tm)
    Mp = n_blk * tm
    a = a.astype(jnp.bfloat16)
    if Mp != M:
        a = jnp.pad(a, ((0, Mp - M), (0, 0)))
    w = w.astype(jnp.bfloat16)

    in_specs = [pl.BlockSpec((tm, K), lambda i: (i, 0)),
                pl.BlockSpec((K, N), lambda i: (0, 0))]
    args = [a, w]
    if bias is not None:
        in_specs.append(pl.BlockSpec((1, N), lambda i: (0, 0)))
        args.append(bias.reshape(1, N).astype(jnp.float32))
        kern = _matmul_bias_kernel
    else:
        kern = _matmul_kernel

    out = pl.pallas_call(
        kern,
        out_shape=jax.ShapeDtypeStruct((Mp, N), out_dtype),
        grid_spec=pltpu.PrefetchScalarGridSpec(
            num_scalar_prefetch=0,
            grid=(n_blk,),
            in_specs=in_specs,
            out_specs=pl.BlockSpec((tm, N), lambda i: (i, 0)),
        ),
        compiler_params=pltpu.CompilerParams(
            dimension_semantics=("parallel",),
        ),
    )(*args)
    return out[:M] if Mp != M else out


# -----------------------------------------------------------------------------
# Streaming 3x3 dilated conv (per-tap accumulation, no im2col), optional
# per-sample per-channel input scale (SE fusion) folded in.
# -----------------------------------------------------------------------------

def _conv3x3_body(xs, w_ref, b_ref, o_ref, s, *, dil, H, W):
    HW = H * W
    n_out = w_ref.shape[-1]
    acc = jnp.zeros((HW, n_out), jnp.float32)
    for ky in range(3):
        off = ky * dil * W                       # static row offset into the slab
        for kx in range(3):
            win = xs[kx][0, pl.ds(off, HW), :]   # (HW, Cin) bf16
            if s is not None:
                win = win * s                    # SE per-channel scale (bf16)
            acc = acc + jnp.dot(win, w_ref[ky * 3 + kx],
                                preferred_element_type=jnp.float32)
    o_ref[0] = (acc + b_ref[...]).astype(o_ref.dtype)


def _conv3x3_kernel(x0, x1, x2, w_ref, b_ref, o_ref, *, dil, H, W):
    _conv3x3_body((x0, x1, x2), w_ref, b_ref, o_ref, None, dil=dil, H=H, W=W)


def _conv3x3_scaled_kernel(x0, x1, x2, w_ref, b_ref, s_ref, o_ref, *, dil, H, W):
    _conv3x3_body((x0, x1, x2), w_ref, b_ref, o_ref, s_ref[0], dil=dil, H=H, W=W)


def conv3x3(x_nhwc, w_taps, bias, *, dilation, scale=None, out_dtype=jnp.bfloat16):
    """3x3 dilated conv (padding == dilation), weights as (9, Cin, Nout) per-tap.

    The wrapper builds three width-shifted, H-padded slabs (one per kx tap) so the
    kernel only does static contiguous slices + 9 accumulated matmuls per sample.
    """
    B, H, W, Cin = x_nhwc.shape
    d = dilation
    Hp = H + 2 * d
    assert w_taps.shape[0] == 9 and w_taps.shape[1] == Cin
    n_out = w_taps.shape[-1]

    xp = jnp.pad(x_nhwc.astype(jnp.bfloat16), ((0, 0), (d, d), (d, d), (0, 0)))
    # kx-shifted slabs, flattened so each (ky, kx) tap is a contiguous row window.
    slabs = [xp[:, :, kx * d:kx * d + W, :].reshape(B, Hp * W, Cin)
             for kx in range(3)]

    in_specs = [pl.BlockSpec((1, Hp * W, Cin), lambda b: (b, 0, 0)) for _ in range(3)]
    in_specs += [pl.BlockSpec((9, Cin, n_out), lambda b: (0, 0, 0)),
                 pl.BlockSpec((1, n_out), lambda b: (0, 0))]
    args = slabs + [w_taps.astype(jnp.bfloat16),
                    bias.reshape(1, n_out).astype(jnp.float32)]

    if scale is not None:
        in_specs.append(pl.BlockSpec((1, 1, Cin), lambda b: (b, 0, 0)))
        args.append(scale.reshape(B, 1, Cin).astype(jnp.bfloat16))
        kern = functools.partial(_conv3x3_scaled_kernel, dil=d, H=H, W=W)
    else:
        kern = functools.partial(_conv3x3_kernel, dil=d, H=H, W=W)

    # TODO(synk): at production DeepLab sizes (large H*W, Cin up to 2048) the per-sample
    # slabs should be tiled over H with a halo window and the Cin axis K-tiled to bound
    # VMEM; here whole-sample slabs fit comfortably.
    return pl.pallas_call(
        kern,
        out_shape=jax.ShapeDtypeStruct((B, H * W, n_out), out_dtype),
        grid_spec=pltpu.PrefetchScalarGridSpec(
            num_scalar_prefetch=0,
            grid=(B,),
            in_specs=in_specs,
            out_specs=pl.BlockSpec((1, H * W, n_out), lambda b: (b, 0, 0)),
        ),
        compiler_params=pltpu.CompilerParams(
            dimension_semantics=("parallel",),
        ),
    )(*args)


# -----------------------------------------------------------------------------
# GroupNorm (+ optional ReLU), single-pass stats, also emits per-channel means
# of the (post-activation) output so the SE pooling never re-reads activations.
# -----------------------------------------------------------------------------

def _groupnorm_kernel(x_ref, agg_cg_ref, agg_gc_ref, g_ref, b_ref,
                      o_ref, mean_ref, *, eps, inv_count, inv_hw, apply_relu):
    x = x_ref[0].astype(jnp.float32)                               # (HW, C)
    agg_cg = agg_cg_ref[...]                                       # (C, G) one-hot
    agg_gc = agg_gc_ref[...]                                       # (G, C)
    col_sum = jnp.sum(x, axis=0, keepdims=True)                    # (1, C)
    col_sq = jnp.sum(x * x, axis=0, keepdims=True)                 # (1, C)
    g_mean = jnp.dot(col_sum, agg_cg,
                     preferred_element_type=jnp.float32) * inv_count   # (1, G)
    g_sq = jnp.dot(col_sq, agg_cg,
                   preferred_element_type=jnp.float32) * inv_count     # (1, G)
    g_var = jnp.maximum(g_sq - g_mean * g_mean, 0.0)
    mean_c = jnp.dot(g_mean, agg_gc, preferred_element_type=jnp.float32)
    rstd_c = jnp.dot(jax.lax.rsqrt(g_var + eps), agg_gc,
                     preferred_element_type=jnp.float32)
    y = (x - mean_c) * rstd_c * g_ref[...] + b_ref[...]
    if apply_relu:
        y = jnp.maximum(y, 0.0)
    o_ref[0] = y.astype(o_ref.dtype)
    mean_ref[0] = jnp.sum(y, axis=0, keepdims=True) * inv_hw       # (1, C) f32


def group_norm(x, gamma, beta, *, num_groups, eps=1e-5, apply_relu=False,
               out_dtype=jnp.bfloat16):
    """GroupNorm per sample over (group-channels, HW); x is (B, HW, C).

    Returns (normalized (B,HW,C) in out_dtype, per-channel mean of the output (B,C) f32).
    """
    B, HW, C = x.shape
    G = num_groups
    Cg = C // G
    agg_cg = (jnp.arange(C)[:, None] // Cg ==
              jnp.arange(G)[None, :]).astype(jnp.float32)           # (C, G)
    agg_gc = agg_cg.T                                               # (G, C)
    kern = functools.partial(_groupnorm_kernel, eps=float(eps),
                             inv_count=1.0 / float(HW * Cg),
                             inv_hw=1.0 / float(HW),
                             apply_relu=apply_relu)
    y, mean = pl.pallas_call(
        kern,
        out_shape=(jax.ShapeDtypeStruct((B, HW, C), out_dtype),
                   jax.ShapeDtypeStruct((B, 1, C), jnp.float32)),
        grid_spec=pltpu.PrefetchScalarGridSpec(
            num_scalar_prefetch=0,
            grid=(B,),
            in_specs=[
                pl.BlockSpec((1, HW, C), lambda b: (b, 0, 0)),
                pl.BlockSpec((C, G), lambda b: (0, 0)),
                pl.BlockSpec((G, C), lambda b: (0, 0)),
                pl.BlockSpec((1, C), lambda b: (0, 0)),
                pl.BlockSpec((1, C), lambda b: (0, 0)),
            ],
            out_specs=(pl.BlockSpec((1, HW, C), lambda b: (b, 0, 0)),
                       pl.BlockSpec((1, 1, C), lambda b: (b, 0, 0))),
        ),
        compiler_params=pltpu.CompilerParams(
            dimension_semantics=("parallel",),
        ),
    )(x, agg_cg, agg_gc,
      gamma.reshape(1, C).astype(jnp.float32),
      beta.reshape(1, C).astype(jnp.float32))
    return y, mean.reshape(B, C)


# -----------------------------------------------------------------------------
# SE MLP on the pooled vector: Linear -> ReLU -> Linear -> sigmoid.
# Only the (B, Cc) scale is produced; applied inside the bottleneck conv kernel.
# -----------------------------------------------------------------------------

def _se_mlp_kernel(p_ref, w1_ref, b1_ref, w2_ref, b2_ref, o_ref):
    p = p_ref[...]                                                   # (B, Cc) f32
    h = jnp.dot(p, w1_ref[...], preferred_element_type=jnp.float32) + b1_ref[...]
    h = jnp.maximum(h, 0.0)
    s = jnp.dot(h, w2_ref[...], preferred_element_type=jnp.float32) + b2_ref[...]
    o_ref[...] = 1.0 / (1.0 + jnp.exp(-s))


def se_mlp(pooled, w1, b1, w2, b2):
    B, Cc = pooled.shape
    Cr = w1.shape[1]
    return pl.pallas_call(
        _se_mlp_kernel,
        out_shape=jax.ShapeDtypeStruct((B, Cc), jnp.float32),
        grid_spec=pltpu.PrefetchScalarGridSpec(
            num_scalar_prefetch=0,
            grid=(1,),
            in_specs=[
                pl.BlockSpec((B, Cc), lambda i: (0, 0)),
                pl.BlockSpec((Cc, Cr), lambda i: (0, 0)),
                pl.BlockSpec((1, Cr), lambda i: (0, 0)),
                pl.BlockSpec((Cr, Cc), lambda i: (0, 0)),
                pl.BlockSpec((1, Cc), lambda i: (0, 0)),
            ],
            out_specs=pl.BlockSpec((B, Cc), lambda i: (0, 0)),
        ),
        compiler_params=pltpu.CompilerParams(
            dimension_semantics=("arbitrary",),
        ),
    )(pooled.astype(jnp.float32), w1.astype(jnp.float32),
      b1.reshape(1, Cr).astype(jnp.float32),
      w2.astype(jnp.float32), b2.reshape(1, Cc).astype(jnp.float32))


# -----------------------------------------------------------------------------
# Full forward pass (use_se=True, get_feat=False)
# -----------------------------------------------------------------------------

def classifier_module2_forward(x_nchw, params):
    B, Cin, H, W = x_nchw.shape
    HW = H * W
    M = B * HW
    x = jnp.transpose(x_nchw, (0, 2, 3, 1)).astype(jnp.bfloat16)     # NHWC, bf16

    branch_outs = []
    branch_means = []

    # --- branch 0: 1x1 conv + GroupNorm(32) + ReLU -----------------------------
    y = matmul_bias(x.reshape(M, Cin), params["w0"], params["b0"],
                    out_dtype=jnp.bfloat16)
    y, mu = group_norm(y.reshape(B, HW, 256), params["gn0_g"], params["gn0_b"],
                       num_groups=32, apply_relu=True)
    branch_outs.append(y)
    branch_means.append(mu)

    # --- dilated 3x3 branches: streaming conv + GroupNorm(32) + ReLU -----------
    for i, d in enumerate(params["dilations"]):
        y = conv3x3(x, params[f"w{i + 1}"], params[f"b{i + 1}"], dilation=d)
        y, mu = group_norm(y, params[f"gn{i + 1}_g"], params[f"gn{i + 1}_b"],
                           num_groups=32, apply_relu=True)
        branch_outs.append(y)
        branch_means.append(mu)

    # Channel concat of branch outputs (bf16).  Global-average-pool of the concat
    # equals the concat of per-branch means already produced by the GN kernels,
    # so the SE pooling never touches the big activation tensor.
    cat = jnp.concatenate(branch_outs, axis=-1)                      # (B, HW, Cc)
    pooled = jnp.concatenate(branch_means, axis=-1)                  # (B, Cc) f32
    Cc = cat.shape[-1]

    # --- SE scale + bottleneck 3x3 conv (scale fused in) + GroupNorm(32) -------
    se_scale = se_mlp(pooled, params["se_w1"], params["se_b1"],
                      params["se_w2"], params["se_b2"])              # (B, Cc)
    y_bn = conv3x3(cat.reshape(B, H, W, Cc), params["wbn"], params["bbn"],
                   dilation=1, scale=se_scale)                       # (B, HW, 256)
    y_bn, _ = group_norm(y_bn, params["gnbn_g"], params["gnbn_b"],
                         num_groups=32, apply_relu=False)

    # --- head: Dropout2d(0.1) -> 1x1 conv (no bias), lane-padded to 128 --------
    # TODO(synk): Dropout2d implemented as identity (eval-mode semantics);
    # train-mode channel dropout is not reproduced here.
    num_classes = params["whead"].shape[1]
    n_pad = 128 * pl.cdiv(num_classes, 128)
    w_head = jnp.zeros((256, n_pad), jnp.float32).at[:, :num_classes].set(
        params["whead"])
    logits = matmul_bias(y_bn.reshape(M, 256), w_head, None,
                         out_dtype=jnp.float32)[:, :num_classes]
    out = logits.reshape(B, H, W, num_classes)
    return jnp.transpose(out, (0, 3, 1, 2))                          # back to NCHW


# -----------------------------------------------------------------------------
# Deterministic parameter construction (matmul / per-tap weight layouts)
# -----------------------------------------------------------------------------

def make_params(key, inplanes, dilation_series, num_classes):
    n_branch = len(dilation_series) + 1
    Cc = 256 * n_branch
    Cr = Cc // 16
    keys = jax.random.split(key, 16)
    k = iter(keys)

    def kaiming(kk, shape, fan_in):
        return jax.random.normal(kk, shape, jnp.float32) * jnp.sqrt(2.0 / fan_in)

    p = {"dilations": tuple(dilation_series)}
    # branch 0: 1x1 conv inplanes->256 (stored (Cin, 256) for x @ W)
    p["w0"] = kaiming(next(k), (inplanes, 256), inplanes)
    p["b0"] = jnp.zeros((256,), jnp.float32)
    p["gn0_g"] = jnp.ones((256,), jnp.float32)
    p["gn0_b"] = jnp.zeros((256,), jnp.float32)
    # dilated 3x3 branches: per-tap weights (9, Cin, 256), tap index = ky*3+kx
    for i in range(len(dilation_series)):
        p[f"w{i + 1}"] = kaiming(next(k), (9, inplanes, 256), 9 * inplanes)
        p[f"b{i + 1}"] = jnp.zeros((256,), jnp.float32)
        p[f"gn{i + 1}_g"] = jnp.ones((256,), jnp.float32)
        p[f"gn{i + 1}_b"] = jnp.zeros((256,), jnp.float32)
    # SE block linears (stored (in, out) for x @ W)
    p["se_w1"] = jax.random.normal(next(k), (Cc, Cr), jnp.float32) / jnp.sqrt(Cc)
    p["se_b1"] = jnp.zeros((Cr,), jnp.float32)
    p["se_w2"] = jax.random.normal(next(k), (Cr, Cc), jnp.float32) / jnp.sqrt(Cr)
    p["se_b2"] = jnp.zeros((Cc,), jnp.float32)
    # bottleneck 3x3 conv Cc->256 (per-tap layout)
    p["wbn"] = kaiming(next(k), (9, Cc, 256), 9 * Cc)
    p["bbn"] = jnp.zeros((256,), jnp.float32)
    p["gnbn_g"] = jnp.ones((256,), jnp.float32)
    p["gnbn_b"] = jnp.zeros((256,), jnp.float32)
    # head 1x1 conv 256->num_classes, no bias, normal(0, 0.001)
    p["whead"] = jax.random.normal(next(k), (256, num_classes), jnp.float32) * 0.001
    return p


# -----------------------------------------------------------------------------
# Main
# -----------------------------------------------------------------------------

if __name__ == "__main__":
    key = jax.random.PRNGKey(0)
    k_x, k_p = jax.random.split(key)

    B, inplanes, H, W = 2, 64, 16, 16
    dilation_series = [6, 12]          # padding_series == dilation_series
    num_classes = 8

    x = jax.random.normal(k_x, (B, inplanes, H, W), jnp.float32)    # NCHW input
    params = make_params(k_p, inplanes, dilation_series, num_classes)

    out = classifier_module2_forward(x, params)
    out = jax.block_until_ready(out)
    assert out.shape == (B, num_classes, H, W), out.shape
    assert jnp.all(jnp.isfinite(out))
    print("KERNEL_OK")
</pallas_src>

<mosaic_0001>
module attributes {stable_mosaic.version = 11 : i64} {
  func.func @_matmul_bias_kernel(%arg0: i32, %arg1: memref<256x64xbf16, #tpu.memory_space<vmem>>, %arg2: memref<64x256xbf16, #tpu.memory_space<vmem>>, %arg3: memref<1x256xf32, #tpu.memory_space<vmem>>, %arg4: memref<256x256xbf16, #tpu.memory_space<vmem>>) attributes {dimension_semantics = [#tpu.dimension_semantics<parallel>], iteration_bounds = array<i64: 2>, scalar_prefetch = 0 : i64, scratch_operands = 0 : i64, tpu.core_type = #tpu.core_type<tc>, window_params = [{transform_indices = @transform_0, window_bounds = array<i64: 256, 64>}, {pipeline_mode = #tpu.pipeline_mode<synchronous>, transform_indices = @transform_1, window_bounds = array<i64: 64, 256>}, {pipeline_mode = #tpu.pipeline_mode<synchronous>, transform_indices = @transform_2, window_bounds = array<i64: 1, 256>}, {transform_indices = @transform_3, window_bounds = array<i64: 256, 256>}]} {
    %c0 = arith.constant 0 : index
    %c0_0 = arith.constant 0 : index
    %0 = vector.load %arg1[%c0, %c0_0] : memref<256x64xbf16, #tpu.memory_space<vmem>>, vector<256x64xbf16>
    %c0_1 = arith.constant 0 : index
    %c0_2 = arith.constant 0 : index
    %1 = vector.load %arg2[%c0_1, %c0_2] : memref<64x256xbf16, #tpu.memory_space<vmem>>, vector<64x256xbf16>
    %cst = arith.constant dense<0.000000e+00> : vector<256x256xf32>
    %2 = tpu.matmul %0, %1, %cst {dimension_numbers = #tpu.dot_dimension_numbers<[1], [0], [0], [1], [0, 0, 1, 1], [], []>} : vector<256x64xbf16>, vector<64x256xbf16>, vector<256x256xf32> -> vector<256x256xf32>
    %c0_3 = arith.constant 0 : index
    %c0_4 = arith.constant 0 : index
    %3 = vector.load %arg3[%c0_3, %c0_4] : memref<1x256xf32, #tpu.memory_space<vmem>>, vector<1x256xf32>
    %4 = vector.broadcast %3 : vector<1x256xf32> to vector<256x256xf32>
    %5 = arith.addf %2, %4 : vector<256x256xf32>
    %6 = arith.truncf %5 : vector<256x256xf32> to vector<256x256xbf16>
    %c0_5 = arith.constant 0 : index
    %c0_6 = arith.constant 0 : index
    %7 = vector.load %arg4[%c0_5, %c0_6] : memref<256x256xbf16, #tpu.memory_space<vmem>>, vector<256x256xbf16>
    tpu.vector_store %arg4[%c0_5, %c0_6], %6 {strides = array<i32>} : memref<256x256xbf16, #tpu.memory_space<vmem>>, vector<256x256xbf16>,
    return
  }
  func.func @transform_0(%arg0: i32) -> (i32, i32) {
    %c0_i32 = arith.constant 0 : i32
    %c0_i32_0 = arith.constant 0 : i32
    return %arg0, %c0_i32 : i32, i32
  }
  func.func @transform_1(%arg0: i32) -> (i32, i32) {
    %c0_i32 = arith.constant 0 : i32
    %c0_i32_0 = arith.constant 0 : i32
    %c0_i32_1 = arith.constant 0 : i32
    return %c0_i32, %c0_i32_0 : i32, i32
  }
  func.func @transform_2(%arg0: i32) -> (i32, i32) {
    %c0_i32 = arith.constant 0 : i32
    %c0_i32_0 = arith.constant 0 : i32
    %c0_i32_1 = arith.constant 0 : i32
    return %c0_i32, %c0_i32_0 : i32, i32
  }
  func.func @transform_3(%arg0: i32) -> (i32, i32) {
    %c0_i32 = arith.constant 0 : i32
    %c0_i32_0 = arith.constant 0 : i32
    return %arg0, %c0_i32 : i32, i32
  }
}

</mosaic_0001>

<llo_original>
// kernel: tpu_custom_call.1
$region0: #{tpu_custom_call.1}
  #allocation0 [shape = 'u32[]', space=smem, size = 0x4, offset = 0x4, fixed_abs, tag = 'smem constant byte address 0x4 - core index']
  #allocation1 [shape = 'u32[144,128]{1,0:T(1,128)}', space=vmem, size = 0x12000, scoped, tag = 'internal scratch']
  %s0 = inlined_call_operand.vmem [shape: bf16[512,64], index: 0, kind: input, shape index: {}]
  %s1 = inlined_call_operand.vmem [shape: bf16[64,256], index: 1, kind: input, shape index: {}]
  %s2 = inlined_call_operand.vmem [shape: f32[1,256], index: 2, kind: input, shape index: {}]
  %s3 = inlined_call_operand.hbm [shape: bf16[512,256], index: 3, kind: output, shape index: {}]
  %s4 = sld [smem:[#allocation0]]
  $region45: #{tpu_custom_call.1} parent=0
    _
  %s6 = ssub.s32 1, %s4
  %s7 = scalar_select 0, %s6, %s4
  $region1: #{tpu_custom_call.1} parent=0
    #allocation2 [shape = 'u8[262144]{0}', space=vmem, size = 0x40000, scoped, tag = 'output window, operand 0']
    #allocation3 [shape = 's32[2]{0}', space=sflag, size = 0x8, scoped, tag = 'scoped memory for tpu_custom_call.1']
    %8 = vsyncpa [#allocation3], 0
    %s9 = scalar_lea.sflag [#allocation3], 1
    %10 = vsyncpa %s9, 0
    loop: start=0, step=1, limit=4
    $region2: #{tpu_custom_call.1} parent=1 // loop_pre_header
      _
    $region3: #{tpu_custom_call.1} parent=1 // loop_header
      %s12 = sphi 0, %s16
      %p13 = scmp.ge.s32.totalorder %s12, 4
      %s22 = sphi 0, %s24
      %s25 = sphi 0, %s22
      %s26 = sphi 0, %s25
      %s42 = sphi 0, %s26
      %s46 = sphi 0, %s46
      %s48 = sphi 0, %s46
      %s49 = sphi 0, %s48
      %s63 = sphi 0, %s49
      %s67 = sphi 0, %s67
      %s69 = sphi 0, %s67
      %s70 = sphi 0, %s69
      %s84 = sphi 0, %s70
      %s90 = sphi 0, %s92
      %s93 = sphi 0, %s90
      %s94 = sphi 0, %s93
      %s110 = sphi 0, %s94
    $region4: #{tpu_custom_call.1} parent=1 // loop_header_branch
      %15 = sbr.rel (%p13) target = $region8
    $region5: #{tpu_custom_call.1} parent=1 // loop_body
      %s17 = ssub.s32 %s12, 1
      %s18 = ssub.s32 %s12, 2
      %s19 = sadd.s32 %s12, 1
      %s20 = ssub.s32 %s12, %s19
      %p21 = scmp.eq.s32.totalorder %s20, 0
      %s23 = sadd.s32 %s22, 1
      %s24 = scalar_select %p21, %s22, %s23
      %p27 = pneg %p21
      %p28 = scmp.eq.s32.totalorder %s12, 1
      %p29 = por %p27, %p28
      %p30 = scmp.ne.s32.totalorder %s22, %s25
      %p31 = scmp.eq.s32.totalorder %s12, 0
      %p32 = por %p30, %p31
      %p33 = scmp.ne.s32.totalorder %s22, %s25
      %p34 = scmp.eq.s32.totalorder %s17, 1
      %p35 = por %p33, %p34
      %p36 = scmp.ne.s32.totalorder %s25, %s26
      %p37 = scmp.eq.s32.totalorder %s17, 0
      %p38 = por %p36, %p37
      %p39 = scmp.ne.s32.totalorder %s25, %s26
      %p40 = scmp.eq.s32.totalorder %s18, 1
      %p41 = por %p39, %p40
      %p43 = scmp.ne.s32.totalorder %s26, %s42
      %p44 = scmp.eq.s32.totalorder %s18, 0
      %p45 = por %p43, %p44
      %s47 = sadd.s32 %s46, 1
      %p50 = scmp.eq.s32.totalorder %s12, 1
      %p51 = scmp.ne.s32.totalorder %s46, %s48
      %p52 = scmp.eq.s32.totalorder %s12, 0
      %p53 = por %p51, %p52
      %p54 = scmp.ne.s32.totalorder %s46, %s48
      %p55 = scmp.eq.s32.totalorder %s17, 1
      %p56 = por %p54, %p55
      %p57 = scmp.ne.s32.totalorder %s48, %s49
      %p58 = scmp.eq.s32.totalorder %s17, 0
      %p59 = por %p57, %p58
      %p60 = scmp.ne.s32.totalorder %s48, %s49
      %p61 = scmp.eq.s32.totalorder %s18, 1
      %p62 = por %p60, %p61
      %p64 = scmp.ne.s32.totalorder %s49, %s63
      %p65 = scmp.eq.s32.totalorder %s18, 0
      %p66 = por %p64, %p65
      %s68 = sadd.s32 %s67, 1
      %p71 = scmp.eq.s32.totalorder %s12, 1
      %p72 = scmp.ne.s32.totalorder %s67, %s69
      %p73 = scmp.eq.s32.totalorder %s12, 0
      %p74 = por %p72, %p73
      %p75 = scmp.ne.s32.totalorder %s67, %s69
      %p76 = scmp.eq.s32.totalorder %s17, 1
      %p77 = por %p75, %p76
      %p78 = scmp.ne.s32.totalorder %s69, %s70
      %p79 = scmp.eq.s32.totalorder %s17, 0
      %p80 = por %p78, %p79
      %p81 = scmp.ne.s32.totalorder %s69, %s70
      %p82 = scmp.eq.s32.totalorder %s18, 1
      %p83 = por %p81, %p82
      %p85 = scmp.ne.s32.totalorder %s70, %s84
      %p86 = scmp.eq.s32.totalorder %s18, 0
      %p87 = por %p85, %p86
      %s88 = ssub.s32 %s12, %s19
      %p89 = scmp.eq.s32.totalorder %s88, 0
      %s91 = sadd.s32 %s90, 1
      %s92 = scalar_select %p89, %s90, %s91
      %p95 = pneg %p89
      %p96 = scmp.eq.s32.totalorder %s12, 1
      %p97 = por %p95, %p96
      %p98 = scmp.ne.s32.totalorder %s90, %s93
      %p99 = scmp.eq.s32.totalorder %s12, 0
      %p100 = por %p98, %p99
      %p101 = scmp.ne.s32.totalorder %s90, %s93
      %p102 = scmp.eq.s32.totalorder %s17, 1
      %p103 = por %p101, %p102
      %p104 = scmp.ne.s32.totalorder %s93, %s94
      %p105 = scmp.eq.s32.totalorder %s17, 0
      %p106 = por %p104, %p105
      %p107 = scmp.ne.s32.totalorder %s93, %s94
      %p108 = scmp.eq.s32.totalorder %s18, 1
      %p109 = por %p107, %p108
      %p111 = scmp.ne.s32.totalorder %s94, %s110
      %p112 = scmp.eq.s32.totalorder %s18, 0
      %p113 = por %p111, %p112
      %p114 = scmp.le.s32.totalorder 1, %s12
      %p115 = scmp.lt.s32.totalorder %s12, 3
      %p116 = pnand %p114, %p115
      %p117 = pneg %p116
      // Predicated region
      $region9: #{tpu_custom_call.1} parent=5 // pred_check
        _
      $region10: #{tpu_custom_call.1} parent=5 // pred_check_branch
        %119 = sbr.rel (%p116) target = $region12
      $region11: #{tpu_custom_call.1} parent=5 // pred_region
        %s120 = ssub.s32 %s12, 1
        // Predicated region
        $region13: #{tpu_custom_call.1} parent=11 // pred_check
          %p121 = pneg %p59
        $region14: #{tpu_custom_call.1} parent=11 // pred_check_branch
          %123 = sbr.rel (%p121) target = $region16
        $region15: #{tpu_custom_call.1} parent=11 // pred_region
          _
        $region16: #{tpu_custom_call.1} parent=11 // pred_fallthru
          _
        // Predicated region
        $region17: #{tpu_custom_call.1} parent=11 // pred_check
          %p124 = pneg %p80
        $region18: #{tpu_custom_call.1} parent=11 // pred_check_branch
          %126 = sbr.rel (%p124) target = $region20
        $region19: #{tpu_custom_call.1} parent=11 // pred_region
          _
        $region20: #{tpu_custom_call.1} parent=11 // pred_fallthru
          _
      $region12: #{tpu_custom_call.1} parent=5 // pred_fallthru
        _
      %p127 = scmp.lt.s32.totalorder %s12, 2
      // Predicated region
      $region21: #{tpu_custom_call.1} parent=5 // pred_check
        %p128 = pneg %p127
      $region22: #{tpu_custom_call.1} parent=5 // pred_check_branch
        %130 = sbr.rel (%p128) target = $region24
      $region23: #{tpu_custom_call.1} parent=5 // pred_region
        // Predicated region
        $region25: #{tpu_custom_call.1} parent=23 // pred_check
          %p131 = pneg %p32
        $region26: #{tpu_custom_call.1} parent=23 // pred_check_branch
          %133 = sbr.rel (%p131) target = $region28
        $region27: #{tpu_custom_call.1} parent=23 // pred_region
          %s134 = smul.u32 32, %s12
          %p135 = scmp.lt.s32.totalorder %s134, 63
          %s136 = scalar_select %p135, %s134, 63
          %s137 = smul.addr %s136, 4
          %s138 = scalar_lea.vmem %s0, %s137
          %s139 = smul.u32 32, %s12
        $region28: #{tpu_custom_call.1} parent=23 // pred_fallthru
          _
      $region24: #{tpu_custom_call.1} parent=5 // pred_fallthru
        _
      %p140 = scmp.le.s32.totalorder 1, %s12
      %p141 = scmp.lt.s32.totalorder %s12, 3
      %p142 = pnand %p140, %p141
      %p143 = pneg %p142
      // Predicated region
      $region29: #{tpu_custom_call.1} parent=5 // pred_check
        _
      $region30: #{tpu_custom_call.1} parent=5 // pred_check_branch
        %145 = sbr.rel (%p142) target = $region32
      $region31: #{tpu_custom_call.1} parent=5 // pred_region
        %s146 = ssub.s32 %s12, 1
        %s147 = smul.u32 32, %s17
        %p148 = scmp.lt.s32.totalorder %s147, 63
        %s149 = scalar_select %p148, %s147, 63
        %s150 = smul.addr %s149, 4
        %s151 = scalar_lea.vmem %s0, %s150
        %p152 = pneg %p38
        %p153 = pneg %p35
        %p154 = pneg %p59
        %p155 = pneg %p56
        %p156 = pneg %p80
        %p157 = pneg %p77
        %p158 = pneg %p106
        %p159 = pneg %p103
        %s160 = sand.u32 %s93, 1
        %s161 = scalar_lea.sflag [#allocation3], %s160
        %s162 = sand.u32 %s93, 1
        %s163 = smul.addr %s162, 256
        %s164 = scalar_lea.vmem [#allocation2], %s163
        %s165 = smul.u32 32, %s17
        %p166 = scmp.lt.s32.totalorder %s165, 63
        %s167 = scalar_select %p166, %s165, 63
        %s168 = smul.addr %s167, 4
        %s169 = scalar_lea.vmem %s0, %s168
        %s170 = smul.u32 32, %s17
        %s171 = smul.u32 32, %s17
        %v173 = vld [vmem:[%s169] sm:$0xf]
        %v174 = vld [vmem:[%s169 + $0x4] sm:$0xf]
        %v175 = vld [vmem:[%s169 + $0x8] sm:$0xf]
        %v176 = vld [vmem:[%s169 + $0xc] sm:$0xf]
        %v177 = vld [vmem:[%s169 + $0x10] sm:$0xf]
        %v178 = vld [vmem:[%s169 + $0x14] sm:$0xf]
        %v179 = vld [vmem:[%s169 + $0x18] sm:$0xf]
        %v180 = vld [vmem:[%s169 + $0x1c] sm:$0xf]
        %v181 = vld [vmem:[%s169 + $0x20] sm:$0xf]
        %v182 = vld [vmem:[%s169 + $0x24] sm:$0xf]
        %v183 = vld [vmem:[%s169 + $0x28] sm:$0xf]
        %v184 = vld [vmem:[%s169 + $0x2c] sm:$0xf]
        %v185 = vld [vmem:[%s169 + $0x30] sm:$0xf]
        %v186 = vld [vmem:[%s169 + $0x34] sm:$0xf]
        %v187 = vld [vmem:[%s169 + $0x38] sm:$0xf]
        %v188 = vld [vmem:[%s169 + $0x3c] sm:$0xf]
        %v189 = vld [vmem:[%s169 + $0x40] sm:$0xf]
        %v190 = vld [vmem:[%s169 + $0x44] sm:$0xf]
        %v191 = vld [vmem:[%s169 + $0x48] sm:$0xf]
        %v192 = vld [vmem:[%s169 + $0x4c] sm:$0xf]
        %v193 = vld [vmem:[%s169 + $0x50] sm:$0xf]
        %v194 = vld [vmem:[%s169 + $0x54] sm:$0xf]
        %v195 = vld [vmem:[%s169 + $0x58] sm:$0xf]
        %v196 = vld [vmem:[%s169 + $0x5c] sm:$0xf]
        %v197 = vld [vmem:[%s169 + $0x60] sm:$0xf]
        %v198 = vld [vmem:[%s169 + $0x64] sm:$0xf]
        %v199 = vld [vmem:[%s169 + $0x68] sm:$0xf]
        %v200 = vld [vmem:[%s169 + $0x6c] sm:$0xf]
        %v201 = vld [vmem:[%s169 + $0x70] sm:$0xf]
        %v202 = vld [vmem:[%s169 + $0x74] sm:$0xf]
        %v203 = vld [vmem:[%s169 + $0x78] sm:$0xf]
        %v204 = vld [vmem:[%s169 + $0x7c] sm:$0xf]
        %v205 = vld [vmem:[%s1] sm:$0xff]
        %v206 = vld [vmem:[%s1 + $0x8] sm:$0xff]
        %v207 = vld [vmem:[%s1 + $0x10] sm:$0xff]
        %v208 = vld [vmem:[%s1 + $0x18] sm:$0xff]
        %v209 = vld [vmem:[%s1 + $0x20] sm:$0xff]
        %v210 = vld [vmem:[%s1 + $0x28] sm:$0xff]
        %v211 = vld [vmem:[%s1 + $0x30] sm:$0xff]
        %v212 = vld [vmem:[%s1 + $0x38] sm:$0xff]
        %v213 = vld [vmem:[%s2] sm:$0x3]
        %v215 = vlaneseq
        %v216 = vshrl.u32 %v215, 7
        %v217 = vsub.s32 0, %v216
        %v218 = vrot.slane %v213, %v217
        %v219 = vlaneseq
        %v220 = vshrl.u32 %v219, 7
        %v221 = vsub.s32 1, %v220
        %v222 = vrot.slane %v213, %v221
        %v257 = vunpack.c.l.b16 %v173
        %v258 = vunpack.c.l.b16 %v174
        %v259 = vunpack.c.l.b16 %v175
        %v260 = vunpack.c.l.b16 %v176
        %v261 = vunpack.c.l.b16 %v177
        %v262 = vunpack.c.l.b16 %v178
        %v263 = vunpack.c.l.b16 %v179
        %v264 = vunpack.c.l.b16 %v180
        %v265 = vunpack.c.l.b16 %v181
        %v266 = vunpack.c.l.b16 %v182
        %v267 = vunpack.c.l.b16 %v183
        %v268 = vunpack.c.l.b16 %v184
        %v269 = vunpack.c.l.b16 %v185
        %v270 = vunpack.c.l.b16 %v186
        %v271 = vunpack.c.l.b16 %v187
        %v272 = vunpack.c.l.b16 %v188
        %v273 = vunpack.c.l.b16 %v189
        %v274 = vunpack.c.l.b16 %v190
        %v275 = vunpack.c.l.b16 %v191
        %v276 = vunpack.c.l.b16 %v192
        %v277 = vunpack.c.l.b16 %v193
        %v278 = vunpack.c.l.b16 %v194
        %v279 = vunpack.c.l.b16 %v195
        %v280 = vunpack.c.l.b16 %v196
        %v281 = vunpack.c.l.b16 %v197
        %v282 = vunpack.c.l.b16 %v198
        %v283 = vunpack.c.l.b16 %v199
        %v284 = vunpack.c.l.b16 %v200
        %v285 = vunpack.c.l.b16 %v201
        %v286 = vunpack.c.l.b16 %v202
        %v287 = vunpack.c.l.b16 %v203
        %v288 = vunpack.c.l.b16 %v204
        %v289 = vpack.c.b16 %v258, %v257
        %v290 = vpack.c.b16 %v260, %v259
        %v291 = vpack.c.b16 %v262, %v261
        %v292 = vpack.c.b16 %v264, %v263
        %v293 = vpack.c.b16 %v266, %v265
        %v294 = vpack.c.b16 %v268, %v267
        %v295 = vpack.c.b16 %v270, %v269
        %v296 = vpack.c.b16 %v272, %v271
        %v297 = vpack.c.b16 %v274, %v273
        %v298 = vpack.c.b16 %v276, %v275
        %v299 = vpack.c.b16 %v278, %v277
        %v300 = vpack.c.b16 %v280, %v279
        %v301 = vpack.c.b16 %v282, %v281
        %v302 = vpack.c.b16 %v284, %v283
        %v303 = vpack.c.b16 %v286, %v285
        %v304 = vpack.c.b16 %v288, %v287
        %v313 = vunpack.c.l.b16 %v205
        %v314 = vunpack.c.h.b16 %v205
        %v315 = vunpack.c.l.b16 %v206
        %v316 = vunpack.c.h.b16 %v206
        %v317 = vunpack.c.l.b16 %v207
        %v318 = vunpack.c.h.b16 %v207
        %v319 = vunpack.c.l.b16 %v208
        %v320 = vunpack.c.h.b16 %v208
        %v321 = vunpack.c.l.b16 %v209
        %v322 = vunpack.c.h.b16 %v209
        %v323 = vunpack.c.l.b16 %v210
        %v324 = vunpack.c.h.b16 %v210
        %v325 = vunpack.c.l.b16 %v211
        %v326 = vunpack.c.h.b16 %v211
        %v327 = vunpack.c.l.b16 %v212
        %v328 = vunpack.c.h.b16 %v212
        %v329 = vpack.c.b16 %v315, %v313
        %v330 = vpack.c.b16 %v316, %v314
        %v331 = vpack.c.b16 %v319, %v317
        %v332 = vpack.c.b16 %v320, %v318
        %v333 = vpack.c.b16 %v323, %v321
        %v334 = vpack.c.b16 %v324, %v322
        %v335 = vpack.c.b16 %v327, %v325
        %v336 = vpack.c.b16 %v328, %v326
        %vm345 = vcmask 523264
        %v347 = vsel %vm345, %v289, 0
        %v350 = vsel %vm345, %v290, 0
        %v353 = vsel %vm345, %v291, 0
        %v356 = vsel %vm345, %v292, 0
        %v359 = vsel %vm345, %v293, 0
        %v362 = vsel %vm345, %v294, 0
        %v365 = vsel %vm345, %v295, 0
        %v368 = vsel %vm345, %v296, 0
        %v371 = vsel %vm345, %v297, 0
        %v374 = vsel %vm345, %v298, 0
        %v377 = vsel %vm345, %v299, 0
        %v380 = vsel %vm345, %v300, 0
        %v383 = vsel %vm345, %v301, 0
        %v386 = vsel %vm345, %v302, 0
        %v389 = vsel %vm345, %v303, 0
        %v392 = vsel %vm345, %v304, 0
        %394 = vmatprep.subr.bf16.mxu0 %v330
        %395 = vmatpush1.bf16.msra.mxu0 %v329
        %396 = vmatprep.subr.bf16.mxu0 %v332
        %397 = vmatpush1.bf16.msra.mxu0 %v331
        %398 = vmatprep.subr.bf16.mxu0 %v334
        %399 = vmatpush1.bf16.msra.mxu0 %v333
        %400 = vmatprep.subr.bf16.mxu0 %v336
        %401 = vmatpush1.bf16.msra.mxu0 %v335
        %402 = vmatprep.subr.bf16.mxu0 0
        %403 = vmatpush1.bf16.msra.mxu0 0
        %404 = vmatprep.subr.bf16.mxu0 0
        %405 = vmatpush1.bf16.msra.mxu0 0
        %406 = vmatprep.subr.bf16.mxu0 0
        %407 = vmatpush1.bf16.msra.mxu0 0
        %408 = vmatprep.subr.bf16.mxu0 0
        %409 = vmatpush1.bf16.msra.mxu0 0
        %410 = vmatprep.subr.bf16.mxu0 0
        %411 = vmatpush1.bf16.msra.mxu0 0
        %412 = vmatprep.subr.bf16.mxu0 0
        %413 = vmatpush1.bf16.msra.mxu0 0
        %414 = vmatprep.subr.bf16.mxu0 0
        %415 = vmatpush1.bf16.msra.mxu0 0
        %416 = vmatprep.subr.bf16.mxu0 0
        %417 = vmatpush1.bf16.msra.mxu0 0
        %418 = vmatprep.subr.bf16.mxu0 0
        %419 = vmatpush1.bf16.msra.mxu0 0
        %420 = vmatprep.subr.bf16.mxu0 0
        %421 = vmatpush1.bf16.msra.mxu0 0
        %422 = vmatprep.subr.bf16.mxu0 0
        %423 = vmatpush1.bf16.msra.mxu0 0
        %424 = vmatprep.subr.bf16.mxu0 0
        %425 = vmatpush1.bf16.msra.mxu0 0
        %426 = vmatprep.mubr.bf16.mxu0 0
        %427 = vmatmul.mubr.bf16.gmra.mrb[0].mxu0 %v347
        %v428 = vpop.f32.mrb[0].mxu0
        %v429 = vadd.f32 %v218, %v428
        %v430 = vpop.f32.mrb[0].mxu0
        %v431 = vadd.f32 %v222, %v430
        %v432 = vpop.f32.mrb[0].mxu0
        %v433 = vadd.f32 %v218, %v432
        %v434 = vpop.f32.mrb[0].mxu0
        %v435 = vadd.f32 %v222, %v434
        %436 = vmatprep.mubr.bf16.mxu0 0
        %437 = vmatmul.mubr.bf16.gmra.mrb[0].mxu0 %v350
        %v438 = vpop.f32.mrb[0].mxu0
        %v439 = vadd.f32 %v218, %v438
        %v440 = vpop.f32.mrb[0].mxu0
        %v441 = vadd.f32 %v222, %v440
        %v442 = vpop.f32.mrb[0].mxu0
        %v443 = vadd.f32 %v218, %v442
        %v444 = vpop.f32.mrb[0].mxu0
        %v445 = vadd.f32 %v222, %v444
        %446 = vmatprep.mubr.bf16.mxu0 0
        %447 = vmatmul.mubr.bf16.gmra.mrb[0].mxu0 %v353
        %v448 = vpop.f32.mrb[0].mxu0
        %v449 = vadd.f32 %v218, %v448
        %v450 = vpop.f32.mrb[0].mxu0
        %v451 = vadd.f32 %v222, %v450
        %v452 = vpop.f32.mrb[0].mxu0
        %v453 = vadd.f32 %v218, %v452
        %v454 = vpop.f32.mrb[0].mxu0
        %v455 = vadd.f32 %v222, %v454
        %456 = vmatprep.mubr.bf16.mxu0 0
        %457 = vmatmul.mubr.bf16.gmra.mrb[0].mxu0 %v356
        %v458 = vpop.f32.mrb[0].mxu0
        %v459 = vadd.f32 %v218, %v458
        %v460 = vpop.f32.mrb[0].mxu0
        %v461 = vadd.f32 %v222, %v460
        %v462 = vpop.f32.mrb[0].mxu0
        %v463 = vadd.f32 %v218, %v462
        %v464 = vpop.f32.mrb[0].mxu0
        %v465 = vadd.f32 %v222, %v464
        %466 = vmatprep.mubr.bf16.mxu0 0
        %467 = vmatmul.mubr.bf16.gmra.mrb[0].mxu0 %v359
        %v468 = vpop.f32.mrb[0].mxu0
        %v469 = vadd.f32 %v218, %v468
        %v470 = vpop.f32.mrb[0].mxu0
        %v471 = vadd.f32 %v222, %v470
        %v472 = vpop.f32.mrb[0].mxu0
        %v473 = vadd.f32 %v218, %v472
        %v474 = vpop.f32.mrb[0].mxu0
        %v475 = vadd.f32 %v222, %v474
        %476 = vmatprep.mubr.bf16.mxu0 0
        %477 = vmatmul.mubr.bf16.gmra.mrb[0].mxu0 %v362
        %v478 = vpop.f32.mrb[0].mxu0
        %v479 = vadd.f32 %v218, %v478
        %v480 = vpop.f32.mrb[0].mxu0
        %v481 = vadd.f32 %v222, %v480
        %v482 = vpop.f32.mrb[0].mxu0
        %v483 = vadd.f32 %v218, %v482
        %v484 = vpop.f32.mrb[0].mxu0
        %v485 = vadd.f32 %v222, %v484
        %486 = vmatprep.mubr.bf16.mxu0 0
        %487 = vmatmul.mubr.bf16.gmra.mrb[0].mxu0 %v365
        %v488 = vpop.f32.mrb[0].mxu0
        %v489 = vadd.f32 %v218, %v488
        %v490 = vpop.f32.mrb[0].mxu0
        %v491 = vadd.f32 %v222, %v490
        %v492 = vpop.f32.mrb[0].mxu0
        %v493 = vadd.f32 %v218, %v492
        %v494 = vpop.f32.mrb[0].mxu0
        %v495 = vadd.f32 %v222, %v494
        %496 = vmatprep.mubr.bf16.mxu0 0
        %497 = vmatmul.mubr.bf16.gmra.mrb[0].mxu0 %v368
        %v498 = vpop.f32.mrb[0].mxu0
        %v499 = vadd.f32 %v218, %v498
        %v500 = vpop.f32.mrb[0].mxu0
        %v501 = vadd.f32 %v222, %v500
        %v502 = vpop.f32.mrb[0].mxu0
        %v503 = vadd.f32 %v218, %v502
        %v504 = vpop.f32.mrb[0].mxu0
        %v505 = vadd.f32 %v222, %v504
        %506 = vmatprep.mubr.bf16.mxu0 0
        %507 = vmatmul.mubr.bf16.gmra.mrb[0].mxu0 %v371
        %v508 = vpop.f32.mrb[0].mxu0
        %v509 = vadd.f32 %v218, %v508
        %v510 = vpop.f32.mrb[0].mxu0
        %v511 = vadd.f32 %v222, %v510
        %v512 = vpop.f32.mrb[0].mxu0
        %v513 = vadd.f32 %v218, %v512
        %v514 = vpop.f32.mrb[0].mxu0
        %v515 = vadd.f32 %v222, %v514
        %516 = vmatprep.mubr.bf16.mxu0 0
        %517 = vmatmul.mubr.bf16.gmra.mrb[0].mxu0 %v374
        %v518 = vpop.f32.mrb[0].mxu0
        %v519 = vadd.f32 %v218, %v518
        %v520 = vpop.f32.mrb[0].mxu0
        %v521 = vadd.f32 %v222, %v520
        %v522 = vpop.f32.mrb[0].mxu0
        %v523 = vadd.f32 %v218, %v522
        %v524 = vpop.f32.mrb[0].mxu0
        %v525 = vadd.f32 %v222, %v524
        %526 = vmatprep.mubr.bf16.mxu0 0
        %527 = vmatmul.mubr.bf16.gmra.mrb[0].mxu0 %v377
        %v528 = vpop.f32.mrb[0].mxu0
        %v529 = vadd.f32 %v218, %v528
        %v530 = vpop.f32.mrb[0].mxu0
        %v531 = vadd.f32 %v222, %v530
        %v532 = vpop.f32.mrb[0].mxu0
        %v533 = vadd.f32 %v218, %v532
        %v534 = vpop.f32.mrb[0].mxu0
        %v535 = vadd.f32 %v222, %v534
        %536 = vmatprep.mubr.bf16.mxu0 0
        %537 = vmatmul.mubr.bf16.gmra.mrb[0].mxu0 %v380
        %v538 = vpop.f32.mrb[0].mxu0
        %v539 = vadd.f32 %v218, %v538
        %v540 = vpop.f32.mrb[0].mxu0
        %v541 = vadd.f32 %v222, %v540
        %v542 = vpop.f32.mrb[0].mxu0
        %v543 = vadd.f32 %v218, %v542
        %v544 = vpop.f32.mrb[0].mxu0
        %v545 = vadd.f32 %v222, %v544
        %546 = vmatprep.mubr.bf16.mxu0 0
        %547 = vmatmul.mubr.bf16.gmra.mrb[0].mxu0 %v383
        %v548 = vpop.f32.mrb[0].mxu0
        %v549 = vadd.f32 %v218, %v548
        %v550 = vpop.f32.mrb[0].mxu0
        %v551 = vadd.f32 %v222, %v550
        %v552 = vpop.f32.mrb[0].mxu0
        %v553 = vadd.f32 %v218, %v552
        %v554 = vpop.f32.mrb[0].mxu0
        %v555 = vadd.f32 %v222, %v554
        %556 = vmatprep.mubr.bf16.mxu0 0
        %557 = vmatmul.mubr.bf16.gmra.mrb[0].mxu0 %v386
        %v558 = vpop.f32.mrb[0].mxu0
        %v559 = vadd.f32 %v218, %v558
        %v560 = vpop.f32.mrb[0].mxu0
        %v561 = vadd.f32 %v222, %v560
        %v562 = vpop.f32.mrb[0].mxu0
        %v563 = vadd.f32 %v218, %v562
        %v564 = vpop.f32.mrb[0].mxu0
        %v565 = vadd.f32 %v222, %v564
        %566 = vmatprep.mubr.bf16.mxu0 0
        %567 = vmatmul.mubr.bf16.gmra.mrb[0].mxu0 %v389
        %v568 = vpop.f32.mrb[0].mxu0
        %v569 = vadd.f32 %v218, %v568
        %v570 = vpop.f32.mrb[0].mxu0
        %v571 = vadd.f32 %v222, %v570
        %v572 = vpop.f32.mrb[0].mxu0
        %v573 = vadd.f32 %v218, %v572
        %v574 = vpop.f32.mrb[0].mxu0
        %v575 = vadd.f32 %v222, %v574
        %576 = vmatprep.mubr.bf16.mxu0 0
        %577 = vmatmul.mubr.bf16.gmra.mrb[0].mxu0 %v392
        %v578 = vpop.f32.mrb[0].mxu0
        %v579 = vadd.f32 %v218, %v578
        %v580 = vpop.f32.mrb[0].mxu0
        %v581 = vadd.f32 %v222, %v580
        %v582 = vpop.f32.mrb[0].mxu0
        %v583 = vadd.f32 %v218, %v582
        %v584 = vpop.f32.mrb[0].mxu0
        %v585 = vadd.f32 %v222, %v584
        %586 = vdwg.mxu0
        %v587 = vpack.c.bf16 %v433, %v429
        %v588 = vpack.c.bf16 %v435, %v431
        %v589 = vpack.c.bf16 %v443, %v439
        %v590 = vpack.c.bf16 %v445, %v441
        %v591 = vpack.c.bf16 %v453, %v449
        %v592 = vpack.c.bf16 %v455, %v451
        %v593 = vpack.c.bf16 %v463, %v459
        %v594 = vpack.c.bf16 %v465, %v461
        %v595 = vpack.c.bf16 %v473, %v469
        %v596 = vpack.c.bf16 %v475, %v471
        %v597 = vpack.c.bf16 %v483, %v479
        %v598 = vpack.c.bf16 %v485, %v481
        %v599 = vpack.c.bf16 %v493, %v489
        %v600 = vpack.c.bf16 %v495, %v491
        %v601 = vpack.c.bf16 %v503, %v499
        %v602 = vpack.c.bf16 %v505, %v501
        %v603 = vpack.c.bf16 %v513, %v509
        %v604 = vpack.c.bf16 %v515, %v511
        %v605 = vpack.c.bf16 %v523, %v519
        %v606 = vpack.c.bf16 %v525, %v521
        %v607 = vpack.c.bf16 %v533, %v529
        %v608 = vpack.c.bf16 %v535, %v531
        %v609 = vpack.c.bf16 %v543, %v539
        %v610 = vpack.c.bf16 %v545, %v541
        %v611 = vpack.c.bf16 %v553, %v549
        %v612 = vpack.c.bf16 %v555, %v551
        %v613 = vpack.c.bf16 %v563, %v559
        %v614 = vpack.c.bf16 %v565, %v561
        %v615 = vpack.c.bf16 %v573, %v569
        %v616 = vpack.c.bf16 %v575, %v571
        %v617 = vpack.c.bf16 %v583, %v579
        %v618 = vpack.c.bf16 %v585, %v581
        %v651 = vunpack.c.l.b16 %v587
        %v652 = vunpack.c.l.b16 %v588
        %v653 = vunpack.c.h.b16 %v587
        %v654 = vunpack.c.h.b16 %v588
        %v655 = vunpack.c.l.b16 %v589
        %v656 = vunpack.c.l.b16 %v590
        %v657 = vunpack.c.h.b16 %v589
        %v658 = vunpack.c.h.b16 %v590
        %v659 = vunpack.c.l.b16 %v591
        %v660 = vunpack.c.l.b16 %v592
        %v661 = vunpack.c.h.b16 %v591
        %v662 = vunpack.c.h.b16 %v592
        %v663 = vunpack.c.l.b16 %v593
        %v664 = vunpack.c.l.b16 %v594
        %v665 = vunpack.c.h.b16 %v593
        %v666 = vunpack.c.h.b16 %v594
        %v667 = vunpack.c.l.b16 %v595
        %v668 = vunpack.c.l.b16 %v596
        %v669 = vunpack.c.h.b16 %v595
        %v670 = vunpack.c.h.b16 %v596
        %v671 = vunpack.c.l.b16 %v597
        %v672 = vunpack.c.l.b16 %v598
        %v673 = vunpack.c.h.b16 %v597
        %v674 = vunpack.c.h.b16 %v598
        %v675 = vunpack.c.l.b16 %v599
        %v676 = vunpack.c.l.b16 %v600
        %v677 = vunpack.c.h.b16 %v599
        %v678 = vunpack.c.h.b16 %v600
        %v679 = vunpack.c.l.b16 %v601
        %v680 = vunpack.c.l.b16 %v602
        %v681 = vunpack.c.h.b16 %v601
        %v682 = vunpack.c.h.b16 %v602
        %v683 = vunpack.c.l.b16 %v603
        %v684 = vunpack.c.l.b16 %v604
        %v685 = vunpack.c.h.b16 %v603
        %v686 = vunpack.c.h.b16 %v604
        %v687 = vunpack.c.l.b16 %v605
        %v688 = vunpack.c.l.b16 %v606
        %v689 = vunpack.c.h.b16 %v605
        %v690 = vunpack.c.h.b16 %v606
        %v691 = vunpack.c.l.b16 %v607
        %v692 = vunpack.c.l.b16 %v608
        %v693 = vunpack.c.h.b16 %v607
        %v694 = vunpack.c.h.b16 %v608
        %v695 = vunpack.c.l.b16 %v609
        %v696 = vunpack.c.l.b16 %v610
        %v697 = vunpack.c.h.b16 %v609
        %v698 = vunpack.c.h.b16 %v610
        %v699 = vunpack.c.l.b16 %v611
        %v700 = vunpack.c.l.b16 %v612
        %v701 = vunpack.c.h.b16 %v611
        %v702 = vunpack.c.h.b16 %v612
        %v703 = vunpack.c.l.b16 %v613
        %v704 = vunpack.c.l.b16 %v614
        %v705 = vunpack.c.h.b16 %v613
        %v706 = vunpack.c.h.b16 %v614
        %v707 = vunpack.c.l.b16 %v615
        %v708 = vunpack.c.l.b16 %v616
        %v709 = vunpack.c.h.b16 %v615
        %v710 = vunpack.c.h.b16 %v616
        %v711 = vunpack.c.l.b16 %v617
        %v712 = vunpack.c.l.b16 %v618
        %v713 = vunpack.c.h.b16 %v617
        %v714 = vunpack.c.h.b16 %v618
        %v715 = vpack.c.b16 %v652, %v651
        %v716 = vpack.c.b16 %v654, %v653
        %v717 = vpack.c.b16 %v656, %v655
        %v718 = vpack.c.b16 %v658, %v657
        %v719 = vpack.c.b16 %v660, %v659
        %v720 = vpack.c.b16 %v662, %v661
        %v721 = vpack.c.b16 %v664, %v663
        %v722 = vpack.c.b16 %v666, %v665
        %v723 = vpack.c.b16 %v668, %v667
        %v724 = vpack.c.b16 %v670, %v669
        %v725 = vpack.c.b16 %v672, %v671
        %v726 = vpack.c.b16 %v674, %v673
        %v727 = vpack.c.b16 %v676, %v675
        %v728 = vpack.c.b16 %v678, %v677
        %v729 = vpack.c.b16 %v680, %v679
        %v730 = vpack.c.b16 %v682, %v681
        %v731 = vpack.c.b16 %v684, %v683
        %v732 = vpack.c.b16 %v686, %v685
        %v733 = vpack.c.b16 %v688, %v687
        %v734 = vpack.c.b16 %v690, %v689
        %v735 = vpack.c.b16 %v692, %v691
        %v736 = vpack.c.b16 %v694, %v693
        %v737 = vpack.c.b16 %v696, %v695
        %v738 = vpack.c.b16 %v698, %v697
        %v739 = vpack.c.b16 %v700, %v699
        %v740 = vpack.c.b16 %v702, %v701
        %v741 = vpack.c.b16 %v704, %v703
        %v742 = vpack.c.b16 %v706, %v705
        %v743 = vpack.c.b16 %v708, %v707
        %v744 = vpack.c.b16 %v710, %v709
        %v745 = vpack.c.b16 %v712, %v711
        %v746 = vpack.c.b16 %v714, %v713
        %779 = vst [vmem:[%s164] sm:$0xff] %v715
        %780 = vst [vmem:[%s164 + $0x8] sm:$0xff] %v716
        %781 = vst [vmem:[%s164 + $0x10] sm:$0xff] %v717
        %782 = vst [vmem:[%s164 + $0x18] sm:$0xff] %v718
        %783 = vst [vmem:[%s164 + $0x20] sm:$0xff] %v719
        %784 = vst [vmem:[%s164 + $0x28] sm:$0xff] %v720
        %785 = vst [vmem:[%s164 + $0x30] sm:$0xff] %v721
        %786 = vst [vmem:[%s164 + $0x38] sm:$0xff] %v722
        %787 = vst [vmem:[%s164 + $0x40] sm:$0xff] %v723
        %788 = vst [vmem:[%s164 + $0x48] sm:$0xff] %v724
        %789 = vst [vmem:[%s164 + $0x50] sm:$0xff] %v725
        %790 = vst [vmem:[%s164 + $0x58] sm:$0xff] %v726
        %791 = vst [vmem:[%s164 + $0x60] sm:$0xff] %v727
        %792 = vst [vmem:[%s164 + $0x68] sm:$0xff] %v728
        %793 = vst [vmem:[%s164 + $0x70] sm:$0xff] %v729
        %794 = vst [vmem:[%s164 + $0x78] sm:$0xff] %v730
        %795 = vst [vmem:[%s164 + $0x80] sm:$0xff] %v731
        %796 = vst [vmem:[%s164 + $0x88] sm:$0xff] %v732
        %797 = vst [vmem:[%s164 + $0x90] sm:$0xff] %v733
        %798 = vst [vmem:[%s164 + $0x98] sm:$0xff] %v734
        %799 = vst [vmem:[%s164 + $0xa0] sm:$0xff] %v735
        %800 = vst [vmem:[%s164 + $0xa8] sm:$0xff] %v736
        %801 = vst [vmem:[%s164 + $0xb0] sm:$0xff] %v737
        %802 = vst [vmem:[%s164 + $0xb8] sm:$0xff] %v738
        %803 = vst [vmem:[%s164 + $0xc0] sm:$0xff] %v739
        %804 = vst [vmem:[%s164 + $0xc8] sm:$0xff] %v740
        %805 = vst [vmem:[%s164 + $0xd0] sm:$0xff] %v741
        %806 = vst [vmem:[%s164 + $0xd8] sm:$0xff] %v742
        %807 = vst [vmem:[%s164 + $0xe0] sm:$0xff] %v743
        %808 = vst [vmem:[%s164 + $0xe8] sm:$0xff] %v744
        %809 = vst [vmem:[%s164 + $0xf0] sm:$0xff] %v745
        %810 = vst [vmem:[%s164 + $0xf8] sm:$0xff] %v746
        %s811 = sand.u32 %s93, 1
        %s812 = scalar_lea.sflag [#allocation3], %s811
        %s813 = sand.u32 %s93, 1
        %s814 = smul.addr %s813, 256
        %s815 = scalar_lea.vmem [#allocation2], %s814
        // Predicated region
        $region33: #{tpu_custom_call.1} parent=31 // pred_check
          %p816 = pneg %p103
        $region34: #{tpu_custom_call.1} parent=31 // pred_check_branch
          %818 = sbr.rel (%p816) target = $region36
        $region35: #{tpu_custom_call.1} parent=31 // pred_region
          %s819 = smul.u32 32, %s17
          %s821 = ssub.s32 4096, 4096
          %822 = vsyncadd %s812, %s821
          %s823 = smul.addr %s819, 2
          %s824 = smul.addr %s823, 64
          %s825 = scalar_lea.hbm %s3, %s824
          %s826 = sshll.u32 %s815, 4
          %s827 = int_to_ptr.vmem [resolvable:$true] %s826
          %832 = dma.vmem_to_hbm [thread:$0]  %s827, 4096, %s825, %s812, 128, 128, 8
        $region36: #{tpu_custom_call.1} parent=31 // pred_fallthru
          _
      $region32: #{tpu_custom_call.1} parent=5 // pred_fallthru
        _
      %p833 = scmp.le.s32.totalorder 2, %s12
      // Predicated region
      $region37: #{tpu_custom_call.1} parent=5 // pred_check
        %p834 = pneg %p833
      $region38: #{tpu_custom_call.1} parent=5 // pred_check_branch
        %836 = sbr.rel (%p834) target = $region40
      $region39: #{tpu_custom_call.1} parent=5 // pred_region
        %s837 = ssub.s32 %s12, 2
        // Predicated region
        $region41: #{tpu_custom_call.1} parent=39 // pred_check
          %p838 = pneg %p109
        $region42: #{tpu_custom_call.1} parent=39 // pred_check_branch
          %840 = sbr.rel (%p838) target = $region44
        $region43: #{tpu_custom_call.1} parent=39 // pred_region
          %s841 = sand.u32 %s94, 1
          %s842 = scalar_lea.sflag [#allocation3], %s841
          %s843 = sand.u32 %s94, 1
          %s844 = smul.addr %s843, 256
          %s845 = scalar_lea.vmem [#allocation2], %s844
          %846 = dma.done %s842, 4096
        $region44: #{tpu_custom_call.1} parent=39 // pred_fallthru
          _
      $region40: #{tpu_custom_call.1} parent=5 // pred_fallthru
        _
    $region6: #{tpu_custom_call.1} parent=1 // loop_footer
      %s16 = sadd.s32 1, %s12
    $region7: #{tpu_custom_call.1} parent=1 // loop_footer_branch
      %11 = sbr.rel target = $region3
    $region8: #{tpu_custom_call.1} parent=1 // loop_exit
      _
    %847 = vsyncpa [#allocation3], 1
    %s848 = scalar_lea.sflag [#allocation3], 1
    %849 = vsyncpa %s848, 1

</llo_original>
